<compile_context>
chip_gen: v7x
topology: tpu7x:2x2x1
jax: 0.10.0
libtpu: 0.0.40
codegen_flags: <defaults>
</compile_context>

<pallas_src>
import functools

import jax
import jax.numpy as jnp
from jax.experimental import pallas as pl
from jax.experimental.pallas import tpu as pltpu

# ---------------------------------------------------------------------------
# Model hyper-parameters (small, consistent with the module's __init__)
# ---------------------------------------------------------------------------
B = 2            # batch
IN_CHANS = 3     # encoder.in_chans (decoder hard-codes 3 output channels)
H = W = 16       # image spatial size
PATCH = 4        # encoder.patch_size
STRIDE = 4       # encoder_stride (== patch_size, typical SimMIM config)
FEAT = 32        # encoder.num_features
HP, WP = H // PATCH, W // PATCH
NP = HP * WP                     # patches per image
K = IN_CHANS * PATCH * PATCH     # flattened patch dim == decoder out channels

# Lane-dense padded dims (both padded to a full 128-lane vreg / MXU tile)
KP = 128
FP = 128
DEN_LANE = KP - 1                # unused zero lane that carries the block mask count
assert K <= DEN_LANE and FEAT <= FP and KP == FP


# ---------------------------------------------------------------------------
# Pallas kernel: encoder + decoder + per-block masked-L1 partial sums
# ---------------------------------------------------------------------------
def simmim_kernel(xp_ref, m_ref, w_ref, b_ref, out_ref):
    xp = xp_ref[...]                               # (TM, KP) f32 patch pixels
    m = m_ref[...]                                 # (TM, 1)  f32 per-patch mask

    we = w_ref[0]                                  # (KP, FP) bf16 patch embed
    w1 = w_ref[1]                                  # (FP, FP) bf16 MLP
    wd = w_ref[2]                                  # (FP, KP) bf16 decoder 1x1 conv
    be = b_ref[0:1, :]                             # (1, FP)  f32
    tok = b_ref[1:2, :]                            # (1, FP)  f32 mask token
    b1 = b_ref[2:3, :]                             # (1, FP)  f32
    bd = b_ref[3:4, :]                             # (1, KP)  f32

    # --- encoder: patch embedding (bf16 MXU, f32 accumulate) ---
    emb = jnp.dot(xp.astype(jnp.bfloat16), we,
                  preferred_element_type=jnp.float32) + be

    # --- SimMIM mask-token substitution on masked patches (f32 elementwise) ---
    z = emb + (tok - emb) * m

    # --- tiny encoder body: one GELU MLP layer ---
    # TODO(synk): PyTorch nn.GELU defaults to exact erf; tanh approximation is
    # used here for the synthetic encoder.
    h = jax.nn.gelu(
        jnp.dot(z.astype(jnp.bfloat16), w1,
                preferred_element_type=jnp.float32) + b1,
        approximate=True)

    # --- decoder: 1x1 conv == per-patch matmul; PixelShuffle folded in layout ---
    rec = jnp.dot(h.astype(jnp.bfloat16), wd,
                  preferred_element_type=jnp.float32) + bd

    # --- masked-L1 partial sums for this block of patch rows (all f32) ---
    # Padded lanes [K, KP) of both xp and rec are exactly zero, so num_vec is
    # zero there; we stash the block mask count in lane DEN_LANE.
    num_vec = jnp.sum(jnp.abs(xp - rec) * m, axis=0, keepdims=True)   # (1, KP)
    den = jnp.sum(m, axis=0, keepdims=True)                           # (1, 1)
    lane = jax.lax.broadcasted_iota(jnp.int32, (1, KP), 1)
    out = jnp.where(lane == DEN_LANE, den, num_vec)                   # (1, KP)
    out_ref[...] = out.reshape(1, 1, KP)


def _round_up(x, m):
    return (x + m - 1) // m * m


@functools.partial(jax.jit, static_argnames=("block_m",))
def simmim_forward(x, mask, w_stack, b_stack, *, block_m=256):
    """x: (B, IN_CHANS, H, W) float32 NCHW; mask: (B, HP, WP) {0,1}."""
    bsz, c, h_img, w_img = x.shape
    hp, wp = h_img // PATCH, w_img // PATCH
    m_rows = bsz * hp * wp
    k = c * PATCH * PATCH

    # -- glue: extract patches in (c, dy, dx) flatten order, one row per patch --
    xp = x.reshape(bsz, c, hp, PATCH, wp, PATCH)
    xp = xp.transpose(0, 2, 4, 1, 3, 5).reshape(m_rows, k).astype(jnp.float32)
    m_col = mask.reshape(m_rows, 1).astype(jnp.float32)

    # -- pad to lane-dense / tileable shapes (pad rows have mask==0 -> no effect) --
    tm = min(block_m, _round_up(m_rows, 8))
    m_pad = _round_up(m_rows, tm)
    xp = jnp.pad(xp, ((0, m_pad - m_rows), (0, KP - k)))
    m_col = jnp.pad(m_col, ((0, m_pad - m_rows), (0, 0)))
    n_blocks = m_pad // tm

    partials = pl.pallas_call(
        simmim_kernel,
        out_shape=jax.ShapeDtypeStruct((n_blocks, 1, KP), jnp.float32),
        grid_spec=pltpu.PrefetchScalarGridSpec(
            num_scalar_prefetch=0,
            grid=(n_blocks,),
            in_specs=[
                pl.BlockSpec((tm, KP), lambda i: (i, 0)),        # xp tile (pipelined)
                pl.BlockSpec((tm, 1), lambda i: (i, 0)),         # mask tile
                pl.BlockSpec((3, FP, FP), lambda i: (0, 0, 0)),  # weight stack (resident)
                pl.BlockSpec((4, FP), lambda i: (0, 0)),         # bias stack (resident)
            ],
            out_specs=pl.BlockSpec((1, 1, KP), lambda i: (i, 0, 0)),
        ),
        compiler_params=pltpu.CompilerParams(
            dimension_semantics=("parallel",)),
    )(xp, m_col, w_stack, b_stack)

    # -- tiny final reduction over per-block partial sums (XLA, negligible) --
    partials = partials[:, 0, :]                                 # (n_blocks, KP)
    num = jnp.sum(partials[:, :k])
    den = jnp.sum(partials[:, DEN_LANE]) * (PATCH * PATCH)       # repeat_interleave
    return num / (den + 1e-5) / c


# ---------------------------------------------------------------------------
# Parameters: logical (unpadded) init, then pad + pack into 2 arrays
# ---------------------------------------------------------------------------
def init_params(key):
    ks = jax.random.split(key, 4)
    s = 0.05
    return {
        "w_embed":    s * jax.random.normal(ks[0], (K, FEAT), jnp.float32),
        "b_embed":    jnp.zeros((FEAT,), jnp.float32),
        "mask_token": s * jax.random.normal(ks[1], (FEAT,), jnp.float32),
        "w_mlp":      s * jax.random.normal(ks[2], (FEAT, FEAT), jnp.float32),
        "b_mlp":      jnp.zeros((FEAT,), jnp.float32),
        "w_dec":      s * jax.random.normal(ks[3], (FEAT, K), jnp.float32),
        "b_dec":      jnp.zeros((K,), jnp.float32),
    }


def pack_params(p):
    """Zero-pad K->KP / FEAT->FP and pack into 2 arrays (fewer DMAs, lane-dense).

    Zero padding is exact: padded embed/MLP output columns stay 0, padded
    decoder output columns stay 0, so the masked L1 sums are unchanged.
    """
    we = jnp.zeros((KP, FP), jnp.float32).at[:K, :FEAT].set(p["w_embed"])
    w1 = jnp.zeros((FP, FP), jnp.float32).at[:FEAT, :FEAT].set(p["w_mlp"])
    wd = jnp.zeros((FP, KP), jnp.float32).at[:FEAT, :K].set(p["w_dec"])
    w_stack = jnp.stack([we, w1, wd]).astype(jnp.bfloat16)        # (3, 128, 128)

    be = jnp.zeros((FP,), jnp.float32).at[:FEAT].set(p["b_embed"])
    tok = jnp.zeros((FP,), jnp.float32).at[:FEAT].set(p["mask_token"])
    b1 = jnp.zeros((FP,), jnp.float32).at[:FEAT].set(p["b_mlp"])
    bd = jnp.zeros((KP,), jnp.float32).at[:K].set(p["b_dec"])
    b_stack = jnp.stack([be, tok, b1, bd])                        # (4, 128) f32
    return w_stack, b_stack


if __name__ == "__main__":
    key = jax.random.PRNGKey(0)
    k_x, k_m, k_p = jax.random.split(key, 3)

    x = jax.random.normal(k_x, (B, IN_CHANS, H, W), jnp.float32)
    mask = (jax.random.uniform(k_m, (B, HP, WP)) > 0.5).astype(jnp.float32)
    w_stack, b_stack = pack_params(init_params(k_p))

    # block_m=16 -> grid of 2 independent blocks at this toy size (exercises
    # the multi-block partial-sum path).  At realistic SimMIM batch sizes use
    # the default 256.
    loss = simmim_forward(x, mask, w_stack, b_stack, block_m=16)
    jax.block_until_ready(loss)
    assert loss.shape == () and bool(jnp.isfinite(loss))
    print("KERNEL_OK")
</pallas_src>

<mosaic_0001>
module attributes {stable_mosaic.version = 11 : i64} {
  func.func @simmim_kernel(%arg0: i32, %arg1: memref<16x128xf32, #tpu.memory_space<vmem>>, %arg2: memref<16x1xf32, #tpu.memory_space<vmem>>, %arg3: memref<3x128x128xbf16, #tpu.memory_space<vmem>>, %arg4: memref<4x128xf32, #tpu.memory_space<vmem>>, %arg5: memref<1x1x128xf32, #tpu.memory_space<vmem>>) attributes {dimension_semantics = [#tpu.dimension_semantics<parallel>], iteration_bounds = array<i64: 2>, scalar_prefetch = 0 : i64, scratch_operands = 0 : i64, tpu.core_type = #tpu.core_type<tc>, window_params = [{transform_indices = @transform_0, window_bounds = array<i64: 16, 128>}, {transform_indices = @transform_1, window_bounds = array<i64: 16, 1>}, {pipeline_mode = #tpu.pipeline_mode<synchronous>, transform_indices = @transform_2, window_bounds = array<i64: 3, 128, 128>}, {pipeline_mode = #tpu.pipeline_mode<synchronous>, transform_indices = @transform_3, window_bounds = array<i64: 4, 128>}, {transform_indices = @transform_4, window_bounds = array<i64: 1, 1, 128>}]} {
    %c0 = arith.constant 0 : index
    %c0_0 = arith.constant 0 : index
    %0 = vector.load %arg1[%c0, %c0_0] : memref<16x128xf32, #tpu.memory_space<vmem>>, vector<16x128xf32>
    %c0_1 = arith.constant 0 : index
    %c0_2 = arith.constant 0 : index
    %1 = vector.load %arg2[%c0_1, %c0_2] : memref<16x1xf32, #tpu.memory_space<vmem>>, vector<16x1xf32>
    %c0_3 = arith.constant 0 : index
    %c0_4 = arith.constant 0 : index
    %c0_5 = arith.constant 0 : index
    %2 = vector.load %arg3[%c0_3, %c0_4, %c0_5] : memref<3x128x128xbf16, #tpu.memory_space<vmem>>, vector<1x128x128xbf16>
    %3 = vector.shape_cast %2 : vector<1x128x128xbf16> to vector<128x128xbf16>
    %c1 = arith.constant 1 : index
    %c0_6 = arith.constant 0 : index
    %c0_7 = arith.constant 0 : index
    %4 = vector.load %arg3[%c1, %c0_6, %c0_7] : memref<3x128x128xbf16, #tpu.memory_space<vmem>>, vector<1x128x128xbf16>
    %5 = vector.shape_cast %4 : vector<1x128x128xbf16> to vector<128x128xbf16>
    %c2 = arith.constant 2 : index
    %c0_8 = arith.constant 0 : index
    %c0_9 = arith.constant 0 : index
    %6 = vector.load %arg3[%c2, %c0_8, %c0_9] : memref<3x128x128xbf16, #tpu.memory_space<vmem>>, vector<1x128x128xbf16>
    %7 = vector.shape_cast %6 : vector<1x128x128xbf16> to vector<128x128xbf16>
    %c0_10 = arith.constant 0 : index
    %c0_11 = arith.constant 0 : index
    %8 = vector.load %arg4[%c0_10, %c0_11] : memref<4x128xf32, #tpu.memory_space<vmem>>, vector<1x128xf32>
    %c1_12 = arith.constant 1 : index
    %c0_13 = arith.constant 0 : index
    %9 = vector.load %arg4[%c1_12, %c0_13] : memref<4x128xf32, #tpu.memory_space<vmem>>, vector<1x128xf32>
    %c2_14 = arith.constant 2 : index
    %c0_15 = arith.constant 0 : index
    %10 = vector.load %arg4[%c2_14, %c0_15] : memref<4x128xf32, #tpu.memory_space<vmem>>, vector<1x128xf32>
    %c3 = arith.constant 3 : index
    %c0_16 = arith.constant 0 : index
    %11 = vector.load %arg4[%c3, %c0_16] : memref<4x128xf32, #tpu.memory_space<vmem>>, vector<1x128xf32>
    %12 = arith.truncf %0 : vector<16x128xf32> to vector<16x128xbf16>
    %cst = arith.constant dense<0.000000e+00> : vector<16x128xf32>
    %13 = tpu.matmul %12, %3, %cst {dimension_numbers = #tpu.dot_dimension_numbers<[1], [0], [0], [1], [0, 0, 1, 1], [], []>} : vector<16x128xbf16>, vector<128x128xbf16>, vector<16x128xf32> -> vector<16x128xf32>
    %14 = vector.broadcast %8 : vector<1x128xf32> to vector<16x128xf32>
    %15 = arith.addf %13, %14 : vector<16x128xf32>
    %16 = vector.broadcast %9 : vector<1x128xf32> to vector<16x128xf32>
    %17 = arith.subf %16, %15 : vector<16x128xf32>
    %18 = vector.broadcast %1 : vector<16x1xf32> to vector<16x128xf32>
    %19 = arith.mulf %17, %18 : vector<16x128xf32>
    %20 = arith.addf %15, %19 : vector<16x128xf32>
    %21 = arith.truncf %20 : vector<16x128xf32> to vector<16x128xbf16>
    %cst_17 = arith.constant dense<0.000000e+00> : vector<16x128xf32>
    %22 = tpu.matmul %21, %5, %cst_17 {dimension_numbers = #tpu.dot_dimension_numbers<[1], [0], [0], [1], [0, 0, 1, 1], [], []>} : vector<16x128xbf16>, vector<128x128xbf16>, vector<16x128xf32> -> vector<16x128xf32>
    %23 = vector.broadcast %10 : vector<1x128xf32> to vector<16x128xf32>
    %24 = arith.addf %22, %23 : vector<16x128xf32>
    %25 = arith.mulf %24, %24 : vector<16x128xf32>
    %26 = arith.mulf %24, %25 : vector<16x128xf32>
    %cst_18 = arith.constant 4.471500e-02 : f32
    %27 = vector.broadcast %cst_18 : f32 to vector<16x128xf32>
    %28 = arith.mulf %27, %26 : vector<16x128xf32>
    %29 = arith.addf %24, %28 : vector<16x128xf32>
    %cst_19 = arith.constant 0.797884583 : f32
    %30 = vector.broadcast %cst_19 : f32 to vector<16x128xf32>
    %31 = arith.mulf %30, %29 : vector<16x128xf32>
    %32 = math.tanh %31 : vector<16x128xf32>
    %cst_20 = arith.constant 1.000000e+00 : f32
    %33 = vector.broadcast %cst_20 : f32 to vector<16x128xf32>
    %34 = arith.addf %33, %32 : vector<16x128xf32>
    %cst_21 = arith.constant 5.000000e-01 : f32
    %35 = vector.broadcast %cst_21 : f32 to vector<16x128xf32>
    %36 = arith.mulf %35, %34 : vector<16x128xf32>
    %37 = arith.mulf %24, %36 : vector<16x128xf32>
    %38 = arith.truncf %37 : vector<16x128xf32> to vector<16x128xbf16>
    %cst_22 = arith.constant dense<0.000000e+00> : vector<16x128xf32>
    %39 = tpu.matmul %38, %7, %cst_22 {dimension_numbers = #tpu.dot_dimension_numbers<[1], [0], [0], [1], [0, 0, 1, 1], [], []>} : vector<16x128xbf16>, vector<128x128xbf16>, vector<16x128xf32> -> vector<16x128xf32>
    %40 = vector.broadcast %11 : vector<1x128xf32> to vector<16x128xf32>
    %41 = arith.addf %39, %40 : vector<16x128xf32>
    %42 = arith.subf %0, %41 : vector<16x128xf32>
    %43 = math.absf %42 : vector<16x128xf32>
    %44 = vector.broadcast %1 : vector<16x1xf32> to vector<16x128xf32>
    %45 = arith.mulf %43, %44 : vector<16x128xf32>
    %cst_23 = arith.constant dense<0.000000e+00> : vector<128xf32>
    %46 = vector.multi_reduction <add>, %45, %cst_23 [0] : vector<16x128xf32> to vector<128xf32>
    %47 = vector.shape_cast %46 : vector<128xf32> to vector<1x128xf32>
    %cst_24 = arith.constant dense<0.000000e+00> : vector<1xf32>
    %48 = vector.multi_reduction <add>, %1, %cst_24 [0] : vector<16x1xf32> to vector<1xf32>
    %49 = vector.shape_cast %48 : vector<1xf32> to vector<1x1xf32>
    %50 = tpu.iota {dimensions = array<i32: 1>} : vector<1x128xi32>
    %c127_i32 = arith.constant 127 : i32
    %51 = vector.broadcast %c127_i32 : i32 to vector<1x128xi32>
    %52 = arith.cmpi eq, %50, %51 : vector<1x128xi32>
    %53 = vector.shape_cast %49 : vector<1x1xf32> to vector<1x1xf32>
    %54 = vector.broadcast %53 : vector<1x1xf32> to vector<1x128xf32>
    %55 = arith.select %52, %54, %47 : vector<1x128xi1>, vector<1x128xf32>
    %56 = vector.shape_cast %55 : vector<1x128xf32> to vector<1x1x128xf32>
    %c0_25 = arith.constant 0 : index
    %c0_26 = arith.constant 0 : index
    %c0_27 = arith.constant 0 : index
    %57 = vector.load %arg5[%c0_25, %c0_26, %c0_27] : memref<1x1x128xf32, #tpu.memory_space<vmem>>, vector<1x1x128xf32>
    tpu.vector_store %arg5[%c0_25, %c0_26, %c0_27], %56 {strides = array<i32>} : memref<1x1x128xf32, #tpu.memory_space<vmem>>, vector<1x1x128xf32>,
    return
  }
  func.func @transform_0(%arg0: i32) -> (i32, i32) {
    %c0_i32 = arith.constant 0 : i32
    %c0_i32_0 = arith.constant 0 : i32
    return %arg0, %c0_i32 : i32, i32
  }
  func.func @transform_1(%arg0: i32) -> (i32, i32) {
    %c0_i32 = arith.constant 0 : i32
    %c0_i32_0 = arith.constant 0 : i32
    return %arg0, %c0_i32 : i32, i32
  }
  func.func @transform_2(%arg0: i32) -> (i32, i32, i32) {
    %c0_i32 = arith.constant 0 : i32
    %c0_i32_0 = arith.constant 0 : i32
    %c0_i32_1 = arith.constant 0 : i32
    %c0_i32_2 = arith.constant 0 : i32
    return %c0_i32, %c0_i32_0, %c0_i32_1 : i32, i32, i32
  }
  func.func @transform_3(%arg0: i32) -> (i32, i32) {
    %c0_i32 = arith.constant 0 : i32
    %c0_i32_0 = arith.constant 0 : i32
    %c0_i32_1 = arith.constant 0 : i32
    return %c0_i32, %c0_i32_0 : i32, i32
  }
  func.func @transform_4(%arg0: i32) -> (i32, i32, i32) {
    %c0_i32 = arith.constant 0 : i32
    %c0_i32_0 = arith.constant 0 : i32
    %c0_i32_1 = arith.constant 0 : i32
    return %arg0, %c0_i32, %c0_i32_0 : i32, i32, i32
  }
}

</mosaic_0001>

<llo_original>
// kernel: simmim_forward.1
$region0: #{simmim_forward.1}
  #allocation0 [shape = 'u32[]', space=smem, size = 0x4, offset = 0x4, fixed_abs, tag = 'smem constant byte address 0x4 - core index']
  #allocation1 [shape = 'u32[144,128]{1,0:T(1,128)}', space=vmem, size = 0x12000, scoped, tag = 'internal scratch']
  %s0 = inlined_call_operand.vmem [shape: f32[32,128], index: 0, kind: input, shape index: {}]
  %s1 = inlined_call_operand.vmem [shape: f32[32,1], index: 1, kind: input, shape index: {}]
  %s2 = inlined_call_operand.vmem [shape: bf16[3,128,128], index: 2, kind: input, shape index: {}]
  %s3 = inlined_call_operand.vmem [shape: f32[4,128], index: 3, kind: input, shape index: {}]
  %s4 = inlined_call_operand.vmem [shape: f32[2,1,128], index: 4, kind: output, shape index: {}]
  %s5 = sld [smem:[#allocation0]]
  $region49: #{simmim_forward.1} parent=0
    _
  %s7 = ssub.s32 1, %s5
  %s8 = scalar_select 0, %s7, %s5
  loop: start=0, step=1, limit=4
  $region2: #{simmim_forward.1} parent=0 // loop_pre_header
    _
  $region3: #{simmim_forward.1} parent=0 // loop_header
    %s10 = sphi 0, %s14
    %p11 = scmp.ge.s32.totalorder %s10, 4
    %s20 = sphi 0, %s22
    %s23 = sphi 0, %s20
    %s24 = sphi 0, %s23
    %s40 = sphi 0, %s24
    %s46 = sphi 0, %s48
    %s49 = sphi 0, %s46
    %s50 = sphi 0, %s49
    %s66 = sphi 0, %s50
    %s70 = sphi 0, %s70
    %s72 = sphi 0, %s70
    %s73 = sphi 0, %s72
    %s87 = sphi 0, %s73
    %s91 = sphi 0, %s91
    %s93 = sphi 0, %s91
    %s94 = sphi 0, %s93
    %s108 = sphi 0, %s94
    %s114 = sphi 0, %s116
    %s117 = sphi 0, %s114
    %s118 = sphi 0, %s117
    %s134 = sphi 0, %s118
  $region4: #{simmim_forward.1} parent=0 // loop_header_branch
    %13 = sbr.rel (%p11) target = $region8
  $region5: #{simmim_forward.1} parent=0 // loop_body
    %s15 = ssub.s32 %s10, 1
    %s16 = ssub.s32 %s10, 2
    %s17 = sadd.s32 %s10, 1
    %s18 = ssub.s32 %s10, %s17
    %p19 = scmp.eq.s32.totalorder %s18, 0
    %s21 = sadd.s32 %s20, 1
    %s22 = scalar_select %p19, %s20, %s21
    %p25 = pneg %p19
    %p26 = scmp.eq.s32.totalorder %s10, 1
    %p27 = por %p25, %p26
    %p28 = scmp.ne.s32.totalorder %s20, %s23
    %p29 = scmp.eq.s32.totalorder %s10, 0
    %p30 = por %p28, %p29
    %p31 = scmp.ne.s32.totalorder %s20, %s23
    %p32 = scmp.eq.s32.totalorder %s15, 1
    %p33 = por %p31, %p32
    %p34 = scmp.ne.s32.totalorder %s23, %s24
    %p35 = scmp.eq.s32.totalorder %s15, 0
    %p36 = por %p34, %p35
    %p37 = scmp.ne.s32.totalorder %s23, %s24
    %p38 = scmp.eq.s32.totalorder %s16, 1
    %p39 = por %p37, %p38
    %p41 = scmp.ne.s32.totalorder %s24, %s40
    %p42 = scmp.eq.s32.totalorder %s16, 0
    %p43 = por %p41, %p42
    %s44 = ssub.s32 %s10, %s17
    %p45 = scmp.eq.s32.totalorder %s44, 0
    %s47 = sadd.s32 %s46, 1
    %s48 = scalar_select %p45, %s46, %s47
    %p51 = pneg %p45
    %p52 = scmp.eq.s32.totalorder %s10, 1
    %p53 = por %p51, %p52
    %p54 = scmp.ne.s32.totalorder %s46, %s49
    %p55 = scmp.eq.s32.totalorder %s10, 0
    %p56 = por %p54, %p55
    %p57 = scmp.ne.s32.totalorder %s46, %s49
    %p58 = scmp.eq.s32.totalorder %s15, 1
    %p59 = por %p57, %p58
    %p60 = scmp.ne.s32.totalorder %s49, %s50
    %p61 = scmp.eq.s32.totalorder %s15, 0
    %p62 = por %p60, %p61
    %p63 = scmp.ne.s32.totalorder %s49, %s50
    %p64 = scmp.eq.s32.totalorder %s16, 1
    %p65 = por %p63, %p64
    %p67 = scmp.ne.s32.totalorder %s50, %s66
    %p68 = scmp.eq.s32.totalorder %s16, 0
    %p69 = por %p67, %p68
    %s71 = sadd.s32 %s70, 1
    %p74 = scmp.eq.s32.totalorder %s10, 1
    %p75 = scmp.ne.s32.totalorder %s70, %s72
    %p76 = scmp.eq.s32.totalorder %s10, 0
    %p77 = por %p75, %p76
    %p78 = scmp.ne.s32.totalorder %s70, %s72
    %p79 = scmp.eq.s32.totalorder %s15, 1
    %p80 = por %p78, %p79
    %p81 = scmp.ne.s32.totalorder %s72, %s73
    %p82 = scmp.eq.s32.totalorder %s15, 0
    %p83 = por %p81, %p82
    %p84 = scmp.ne.s32.totalorder %s72, %s73
    %p85 = scmp.eq.s32.totalorder %s16, 1
    %p86 = por %p84, %p85
    %p88 = scmp.ne.s32.totalorder %s73, %s87
    %p89 = scmp.eq.s32.totalorder %s16, 0
    %p90 = por %p88, %p89
    %s92 = sadd.s32 %s91, 1
    %p95 = scmp.eq.s32.totalorder %s10, 1
    %p96 = scmp.ne.s32.totalorder %s91, %s93
    %p97 = scmp.eq.s32.totalorder %s10, 0
    %p98 = por %p96, %p97
    %p99 = scmp.ne.s32.totalorder %s91, %s93
    %p100 = scmp.eq.s32.totalorder %s15, 1
    %p101 = por %p99, %p100
    %p102 = scmp.ne.s32.totalorder %s93, %s94
    %p103 = scmp.eq.s32.totalorder %s15, 0
    %p104 = por %p102, %p103
    %p105 = scmp.ne.s32.totalorder %s93, %s94
    %p106 = scmp.eq.s32.totalorder %s16, 1
    %p107 = por %p105, %p106
    %p109 = scmp.ne.s32.totalorder %s94, %s108
    %p110 = scmp.eq.s32.totalorder %s16, 0
    %p111 = por %p109, %p110
    %s112 = ssub.s32 %s10, %s17
    %p113 = scmp.eq.s32.totalorder %s112, 0
    %s115 = sadd.s32 %s114, 1
    %s116 = scalar_select %p113, %s114, %s115
    %p119 = pneg %p113
    %p120 = scmp.eq.s32.totalorder %s10, 1
    %p121 = por %p119, %p120
    %p122 = scmp.ne.s32.totalorder %s114, %s117
    %p123 = scmp.eq.s32.totalorder %s10, 0
    %p124 = por %p122, %p123
    %p125 = scmp.ne.s32.totalorder %s114, %s117
    %p126 = scmp.eq.s32.totalorder %s15, 1
    %p127 = por %p125, %p126
    %p128 = scmp.ne.s32.totalorder %s117, %s118
    %p129 = scmp.eq.s32.totalorder %s15, 0
    %p130 = por %p128, %p129
    %p131 = scmp.ne.s32.totalorder %s117, %s118
    %p132 = scmp.eq.s32.totalorder %s16, 1
    %p133 = por %p131, %p132
    %p135 = scmp.ne.s32.totalorder %s118, %s134
    %p136 = scmp.eq.s32.totalorder %s16, 0
    %p137 = por %p135, %p136
    %p138 = scmp.le.s32.totalorder 1, %s10
    %p139 = scmp.lt.s32.totalorder %s10, 3
    %p140 = pnand %p138, %p139
    %p141 = pneg %p140
    // Predicated region
    $region9: #{simmim_forward.1} parent=5 // pred_check
      _
    $region10: #{simmim_forward.1} parent=5 // pred_check_branch
      %143 = sbr.rel (%p140) target = $region12
    $region11: #{simmim_forward.1} parent=5 // pred_region
      %s144 = ssub.s32 %s10, 1
      // Predicated region
      $region13: #{simmim_forward.1} parent=11 // pred_check
        %p145 = pneg %p83
      $region14: #{simmim_forward.1} parent=11 // pred_check_branch
        %147 = sbr.rel (%p145) target = $region16
      $region15: #{simmim_forward.1} parent=11 // pred_region
        _
      $region16: #{simmim_forward.1} parent=11 // pred_fallthru
        _
      // Predicated region
      $region17: #{simmim_forward.1} parent=11 // pred_check
        %p148 = pneg %p104
      $region18: #{simmim_forward.1} parent=11 // pred_check_branch
        %150 = sbr.rel (%p148) target = $region20
      $region19: #{simmim_forward.1} parent=11 // pred_region
        _
      $region20: #{simmim_forward.1} parent=11 // pred_fallthru
        _
    $region12: #{simmim_forward.1} parent=5 // pred_fallthru
      _
    %p151 = scmp.lt.s32.totalorder %s10, 2
    // Predicated region
    $region21: #{simmim_forward.1} parent=5 // pred_check
      %p152 = pneg %p151
    $region22: #{simmim_forward.1} parent=5 // pred_check_branch
      %154 = sbr.rel (%p152) target = $region24
    $region23: #{simmim_forward.1} parent=5 // pred_region
      // Predicated region
      $region25: #{simmim_forward.1} parent=23 // pred_check
        %p155 = pneg %p30
      $region26: #{simmim_forward.1} parent=23 // pred_check_branch
        %157 = sbr.rel (%p155) target = $region28
      $region27: #{simmim_forward.1} parent=23 // pred_region
        %s158 = smul.u32 2, %s10
        %p159 = scmp.lt.s32.totalorder %s158, 3
        %s160 = scalar_select %p159, %s158, 3
        %s161 = smul.addr %s160, 8
        %s162 = scalar_lea.vmem %s0, %s161
        %s163 = smul.u32 2, %s10
      $region28: #{simmim_forward.1} parent=23 // pred_fallthru
        _
      // Predicated region
      $region29: #{simmim_forward.1} parent=23 // pred_check
        %p164 = pneg %p56
      $region30: #{simmim_forward.1} parent=23 // pred_check_branch
        %166 = sbr.rel (%p164) target = $region32
      $region31: #{simmim_forward.1} parent=23 // pred_region
        %s167 = smul.u32 2, %s10
        %p168 = scmp.lt.s32.totalorder %s167, 3
        %s169 = scalar_select %p168, %s167, 3
        %s170 = smul.addr %s169, 8
        %s171 = scalar_lea.vmem %s1, %s170
        %s172 = smul.u32 2, %s10
      $region32: #{simmim_forward.1} parent=23 // pred_fallthru
        _
    $region24: #{simmim_forward.1} parent=5 // pred_fallthru
      _
    %p173 = scmp.le.s32.totalorder 1, %s10
    %p174 = scmp.lt.s32.totalorder %s10, 3
    %p175 = pnand %p173, %p174
    %p176 = pneg %p175
    // Predicated region
    $region33: #{simmim_forward.1} parent=5 // pred_check
      _
    $region34: #{simmim_forward.1} parent=5 // pred_check_branch
      %178 = sbr.rel (%p175) target = $region36
    $region35: #{simmim_forward.1} parent=5 // pred_region
      %s179 = ssub.s32 %s10, 1
      %s180 = smul.u32 2, %s15
      %p181 = scmp.lt.s32.totalorder %s180, 3
      %s182 = scalar_select %p181, %s180, 3
      %s183 = smul.addr %s182, 8
      %s184 = scalar_lea.vmem %s0, %s183
      %p185 = pneg %p36
      %p186 = pneg %p33
      %s187 = smul.u32 2, %s15
      %p188 = scmp.lt.s32.totalorder %s187, 3
      %s189 = scalar_select %p188, %s187, 3
      %s190 = smul.addr %s189, 8
      %s191 = scalar_lea.vmem %s1, %s190
      %p192 = pneg %p62
      %p193 = pneg %p59
      %p194 = pneg %p83
      %p195 = pneg %p80
      %p196 = pneg %p104
      %p197 = pneg %p101
      %p198 = pneg %p130
      %p199 = pneg %p127
      %p200 = scmp.lt.s32.totalorder %s15, 1
      %s201 = scalar_select %p200, %s15, 1
      %s202 = scalar_lea.vmem %s4, %s201
      %s203 = smul.u32 2, %s15
      %p204 = scmp.lt.s32.totalorder %s203, 3
      %s205 = scalar_select %p204, %s203, 3
      %s206 = smul.addr %s205, 8
      %s207 = scalar_lea.vmem %s0, %s206
      %s208 = smul.u32 2, %s15
      %s209 = smul.u32 2, %s15
      %p210 = scmp.lt.s32.totalorder %s209, 3
      %s211 = scalar_select %p210, %s209, 3
      %s212 = smul.addr %s211, 8
      %s213 = scalar_lea.vmem %s1, %s212
      %s214 = smul.u32 2, %s15
      %p215 = scmp.lt.s32.totalorder %s15, 1
      %s216 = scalar_select %p215, %s15, 1
      %s217 = scalar_lea.vmem %s4, %s216
      %v219 = vld [vmem:[%s207] sm:$0xff]
      %v220 = vld [vmem:[%s207 + $0x8] sm:$0xff]
      %v221 = vld [vmem:[%s213] sm:$0xff]
      %v222 = vld [vmem:[%s213 + $0x8] sm:$0xff]
      %v223 = vld [vmem:[%s2] sm:$0xf]
      %v224 = vld [vmem:[%s2 + $0x4] sm:$0xf]
      %v225 = vld [vmem:[%s2 + $0x8] sm:$0xf]
      %v226 = vld [vmem:[%s2 + $0xc] sm:$0xf]
      %v227 = vld [vmem:[%s2 + $0x10] sm:$0xf]
      %v228 = vld [vmem:[%s2 + $0x14] sm:$0xf]
      %v229 = vld [vmem:[%s2 + $0x18] sm:$0xf]
      %v230 = vld [vmem:[%s2 + $0x1c] sm:$0xf]
      %v231 = vld [vmem:[%s2 + $0x20] sm:$0xf]
      %v232 = vld [vmem:[%s2 + $0x24] sm:$0xf]
      %v233 = vld [vmem:[%s2 + $0x28] sm:$0xf]
      %v234 = vld [vmem:[%s2 + $0x2c] sm:$0xf]
      %v235 = vld [vmem:[%s2 + $0x30] sm:$0xf]
      %v236 = vld [vmem:[%s2 + $0x34] sm:$0xf]
      %v237 = vld [vmem:[%s2 + $0x38] sm:$0xf]
      %v238 = vld [vmem:[%s2 + $0x3c] sm:$0xf]
      %s239 = scalar_lea.vmem %s2, 64
      %v240 = vld [vmem:[%s239] sm:$0xf]
      %v241 = vld [vmem:[%s239 + $0x4] sm:$0xf]
      %v242 = vld [vmem:[%s239 + $0x8] sm:$0xf]
      %v243 = vld [vmem:[%s239 + $0xc] sm:$0xf]
      %v244 = vld [vmem:[%s239 + $0x10] sm:$0xf]
      %v245 = vld [vmem:[%s239 + $0x14] sm:$0xf]
      %v246 = vld [vmem:[%s239 + $0x18] sm:$0xf]
      %v247 = vld [vmem:[%s239 + $0x1c] sm:$0xf]
      %v248 = vld [vmem:[%s239 + $0x20] sm:$0xf]
      %v249 = vld [vmem:[%s239 + $0x24] sm:$0xf]
      %v250 = vld [vmem:[%s239 + $0x28] sm:$0xf]
      %v251 = vld [vmem:[%s239 + $0x2c] sm:$0xf]
      %v252 = vld [vmem:[%s239 + $0x30] sm:$0xf]
      %v253 = vld [vmem:[%s239 + $0x34] sm:$0xf]
      %v254 = vld [vmem:[%s239 + $0x38] sm:$0xf]
      %v255 = vld [vmem:[%s239 + $0x3c] sm:$0xf]
      %s256 = scalar_lea.vmem %s2, 128
      %v257 = vld [vmem:[%s256] sm:$0xf]
      %v258 = vld [vmem:[%s256 + $0x4] sm:$0xf]
      %v259 = vld [vmem:[%s256 + $0x8] sm:$0xf]
      %v260 = vld [vmem:[%s256 + $0xc] sm:$0xf]
      %v261 = vld [vmem:[%s256 + $0x10] sm:$0xf]
      %v262 = vld [vmem:[%s256 + $0x14] sm:$0xf]
      %v263 = vld [vmem:[%s256 + $0x18] sm:$0xf]
      %v264 = vld [vmem:[%s256 + $0x1c] sm:$0xf]
      %v265 = vld [vmem:[%s256 + $0x20] sm:$0xf]
      %v266 = vld [vmem:[%s256 + $0x24] sm:$0xf]
      %v267 = vld [vmem:[%s256 + $0x28] sm:$0xf]
      %v268 = vld [vmem:[%s256 + $0x2c] sm:$0xf]
      %v269 = vld [vmem:[%s256 + $0x30] sm:$0xf]
      %v270 = vld [vmem:[%s256 + $0x34] sm:$0xf]
      %v271 = vld [vmem:[%s256 + $0x38] sm:$0xf]
      %v272 = vld [vmem:[%s256 + $0x3c] sm:$0xf]
      %v273 = vld [vmem:[%s3] sm:$0x1]
      %v274 = vld [vmem:[%s3 + $0x1] sm:$0x1]
      %v275 = vld [vmem:[%s3 + $0x2] sm:$0x1]
      %v276 = vld [vmem:[%s3 + $0x3] sm:$0x1]
      %v277 = vpack.c.bf16 %v220, %v219
      %v278 = vlaneseq
      %v279 = vshrl.u32 %v278, 7
      %v280 = vsub.s32 0, %v279
      %v281 = vrot.slane %v273, %v280
      %v298 = vunpack.c.l.b16 %v223
      %v299 = vunpack.c.l.b16 %v224
      %v300 = vunpack.c.l.b16 %v225
      %v301 = vunpack.c.l.b16 %v226
      %v302 = vunpack.c.l.b16 %v227
      %v303 = vunpack.c.l.b16 %v228
      %v304 = vunpack.c.l.b16 %v229
      %v305 = vunpack.c.l.b16 %v230
      %v306 = vunpack.c.l.b16 %v231
      %v307 = vunpack.c.l.b16 %v232
      %v308 = vunpack.c.l.b16 %v233
      %v309 = vunpack.c.l.b16 %v234
      %v310 = vunpack.c.l.b16 %v235
      %v311 = vunpack.c.l.b16 %v236
      %v312 = vunpack.c.l.b16 %v237
      %v313 = vunpack.c.l.b16 %v238
      %v314 = vpack.c.b16 %v299, %v298
      %v315 = vpack.c.b16 %v301, %v300
      %v316 = vpack.c.b16 %v303, %v302
      %v317 = vpack.c.b16 %v305, %v304
      %v318 = vpack.c.b16 %v307, %v306
      %v319 = vpack.c.b16 %v309, %v308
      %v320 = vpack.c.b16 %v311, %v310
      %v321 = vpack.c.b16 %v313, %v312
      %330 = vmatprep.subr.bf16.mxu0 0
      %331 = vmatpush1.bf16.msra.mxu0 %v314
      %332 = vmatprep.subr.bf16.mxu0 0
      %333 = vmatpush1.bf16.msra.mxu0 %v315
      %334 = vmatprep.subr.bf16.mxu0 0
      %335 = vmatpush1.bf16.msra.mxu0 %v316
      %336 = vmatprep.subr.bf16.mxu0 0
      %337 = vmatpush1.bf16.msra.mxu0 %v317
      %338 = vmatprep.subr.bf16.mxu0 0
      %339 = vmatpush1.bf16.msra.mxu0 %v318
      %340 = vmatprep.subr.bf16.mxu0 0
      %341 = vmatpush1.bf16.msra.mxu0 %v319
      %342 = vmatprep.subr.bf16.mxu0 0
      %343 = vmatpush1.bf16.msra.mxu0 %v320
      %344 = vmatprep.subr.bf16.mxu0 0
      %345 = vmatpush1.bf16.msra.mxu0 %v321
      %346 = vmatprep.subr.bf16.mxu0 0
      %347 = vmatpush1.bf16.msra.mxu0 0
      %348 = vmatprep.subr.bf16.mxu0 0
      %349 = vmatpush1.bf16.msra.mxu0 0
      %350 = vmatprep.subr.bf16.mxu0 0
      %351 = vmatpush1.bf16.msra.mxu0 0
      %352 = vmatprep.subr.bf16.mxu0 0
      %353 = vmatpush1.bf16.msra.mxu0 0
      %354 = vmatprep.subr.bf16.mxu0 0
      %355 = vmatpush1.bf16.msra.mxu0 0
      %356 = vmatprep.subr.bf16.mxu0 0
      %357 = vmatpush1.bf16.msra.mxu0 0
      %358 = vmatprep.subr.bf16.mxu0 0
      %359 = vmatpush1.bf16.msra.mxu0 0
      %360 = vmatprep.subr.bf16.mxu0 0
      %361 = vmatpush1.bf16.msra.mxu0 0
      %362 = vmatprep.mubr.bf16.mxu0 0
      %363 = vmatmul.mubr.bf16.gmra.mrb[0].mxu0 %v277
      %v364 = vpop.f32.mrb[0].mxu0
      %v365 = vadd.f32 %v281, %v364
      %v366 = vpop.f32.mrb[0].mxu0
      %v367 = vpop.f32.mrb[0].mxu0
      %v368 = vadd.f32 %v281, %v367
      %v369 = vpop.f32.mrb[0].mxu0
      %370 = vdwg.mxu0
      %v371 = vlaneseq
      %v372 = vshrl.u32 %v371, 7
      %v373 = vsub.s32 0, %v372
      %v374 = vrot.slane %v274, %v373
      %v375 = vsub.f32 %v374, %v365
      %v376 = vsub.f32 %v374, %v368
      %378 = vset.pattern.permute.xlu0 0
      %379 = vperm.xlu0 %378, %v221
      %v380 = vpop.permute.xlu0 %379
      %383 = vset.pattern.permute.xlu0 0
      %384 = vperm.xlu0 %383, %v222
      %v385 = vpop.permute.xlu0 %384
      %v387 = vmul.f32 %v375, %v380
      %v388 = vmul.f32 %v376, %v385
      %v389 = vadd.f32 %v365, %v387
      %v390 = vadd.f32 %v368, %v388
      %v391 = vpack.c.bf16 %v390, %v389
      %v392 = vlaneseq
      %v393 = vshrl.u32 %v392, 7
      %v394 = vsub.s32 0, %v393
      %v395 = vrot.slane %v275, %v394
      %v412 = vunpack.c.l.b16 %v240
      %v413 = vunpack.c.l.b16 %v241
      %v414 = vunpack.c.l.b16 %v242
      %v415 = vunpack.c.l.b16 %v243
      %v416 = vunpack.c.l.b16 %v244
      %v417 = vunpack.c.l.b16 %v245
      %v418 = vunpack.c.l.b16 %v246
      %v419 = vunpack.c.l.b16 %v247
      %v420 = vunpack.c.l.b16 %v248
      %v421 = vunpack.c.l.b16 %v249
      %v422 = vunpack.c.l.b16 %v250
      %v423 = vunpack.c.l.b16 %v251
      %v424 = vunpack.c.l.b16 %v252
      %v425 = vunpack.c.l.b16 %v253
      %v426 = vunpack.c.l.b16 %v254
      %v427 = vunpack.c.l.b16 %v255
      %v428 = vpack.c.b16 %v413, %v412
      %v429 = vpack.c.b16 %v415, %v414
      %v430 = vpack.c.b16 %v417, %v416
      %v431 = vpack.c.b16 %v419, %v418
      %v432 = vpack.c.b16 %v421, %v420
      %v433 = vpack.c.b16 %v423, %v422
      %v434 = vpack.c.b16 %v425, %v424
      %v435 = vpack.c.b16 %v427, %v426
      %444 = vmatprep.subr.bf16.mxu0 0
      %445 = vmatpush1.bf16.msra.mxu0 %v428
      %446 = vmatprep.subr.bf16.mxu0 0
      %447 = vmatpush1.bf16.msra.mxu0 %v429
      %448 = vmatprep.subr.bf16.mxu0 0
      %449 = vmatpush1.bf16.msra.mxu0 %v430
      %450 = vmatprep.subr.bf16.mxu0 0
      %451 = vmatpush1.bf16.msra.mxu0 %v431
      %452 = vmatprep.subr.bf16.mxu0 0
      %453 = vmatpush1.bf16.msra.mxu0 %v432
      %454 = vmatprep.subr.bf16.mxu0 0
      %455 = vmatpush1.bf16.msra.mxu0 %v433
      %456 = vmatprep.subr.bf16.mxu0 0
      %457 = vmatpush1.bf16.msra.mxu0 %v434
      %458 = vmatprep.subr.bf16.mxu0 0
      %459 = vmatpush1.bf16.msra.mxu0 %v435
      %460 = vmatprep.subr.bf16.mxu0 0
      %461 = vmatpush1.bf16.msra.mxu0 0
      %462 = vmatprep.subr.bf16.mxu0 0
      %463 = vmatpush1.bf16.msra.mxu0 0
      %464 = vmatprep.subr.bf16.mxu0 0
      %465 = vmatpush1.bf16.msra.mxu0 0
      %466 = vmatprep.subr.bf16.mxu0 0
      %467 = vmatpush1.bf16.msra.mxu0 0
      %468 = vmatprep.subr.bf16.mxu0 0
      %469 = vmatpush1.bf16.msra.mxu0 0
      %470 = vmatprep.subr.bf16.mxu0 0
      %471 = vmatpush1.bf16.msra.mxu0 0
      %472 = vmatprep.subr.bf16.mxu0 0
      %473 = vmatpush1.bf16.msra.mxu0 0
      %474 = vmatprep.subr.bf16.mxu0 0
      %475 = vmatpush1.bf16.msra.mxu0 0
      %476 = vmatprep.mubr.bf16.mxu0 0
      %477 = vmatmul.mubr.bf16.gmra.mrb[0].mxu0 %v391
      %v478 = vpop.f32.mrb[0].mxu0
      %v479 = vadd.f32 %v395, %v478
      %v480 = vpop.f32.mrb[0].mxu0
      %v481 = vpop.f32.mrb[0].mxu0
      %v482 = vadd.f32 %v395, %v481
      %v483 = vpop.f32.mrb[0].mxu0
      %484 = vdwg.mxu0
      %v485 = vmul.f32 %v479, %v479
      %v486 = vmul.f32 %v482, %v482
      %v487 = vmul.f32 %v479, %v485
      %v488 = vmul.f32 %v482, %v486
      %v489 = vmul.f32 %v487, 0.044715
      %v490 = vmul.f32 %v488, 0.044715
      %v491 = vadd.f32 %v479, %v489
      %v492 = vadd.f32 %v482, %v490
      %v493 = vmul.f32 %v491, 0.7978846
      %v494 = vmul.f32 %v492, 0.7978846
      %v495 = vtanh.pop %v493
      %v496 = vtanh.pop %v494
      %v497 = vadd.f32 %v495, 1.0
      %v498 = vadd.f32 %v496, 1.0
      %v499 = vmul.f32 %v497, 0.5
      %v500 = vmul.f32 %v498, 0.5
      %v501 = vmul.f32 %v479, %v499
      %v502 = vmul.f32 %v482, %v500
      %v503 = vpack.c.bf16 %v502, %v501
      %v504 = vlaneseq
      %v505 = vshrl.u32 %v504, 7
      %v506 = vsub.s32 0, %v505
      %v507 = vrot.slane %v276, %v506
      %v524 = vunpack.c.l.b16 %v257
      %v525 = vunpack.c.l.b16 %v258
      %v526 = vunpack.c.l.b16 %v259
      %v527 = vunpack.c.l.b16 %v260
      %v528 = vunpack.c.l.b16 %v261
      %v529 = vunpack.c.l.b16 %v262
      %v530 = vunpack.c.l.b16 %v263
      %v531 = vunpack.c.l.b16 %v264
      %v532 = vunpack.c.l.b16 %v265
      %v533 = vunpack.c.l.b16 %v266
      %v534 = vunpack.c.l.b16 %v267
      %v535 = vunpack.c.l.b16 %v268
      %v536 = vunpack.c.l.b16 %v269
      %v537 = vunpack.c.l.b16 %v270
      %v538 = vunpack.c.l.b16 %v271
      %v539 = vunpack.c.l.b16 %v272
      %v540 = vpack.c.b16 %v525, %v524
      %v541 = vpack.c.b16 %v527, %v526
      %v542 = vpack.c.b16 %v529, %v528
      %v543 = vpack.c.b16 %v531, %v530
      %v544 = vpack.c.b16 %v533, %v532
      %v545 = vpack.c.b16 %v535, %v534
      %v546 = vpack.c.b16 %v537, %v536
      %v547 = vpack.c.b16 %v539, %v538
      %556 = vmatprep.subr.bf16.mxu0 0
      %557 = vmatpush1.bf16.msra.mxu0 %v540
      %558 = vmatprep.subr.bf16.mxu0 0
      %559 = vmatpush1.bf16.msra.mxu0 %v541
      %560 = vmatprep.subr.bf16.mxu0 0
      %561 = vmatpush1.bf16.msra.mxu0 %v542
      %562 = vmatprep.subr.bf16.mxu0 0
      %563 = vmatpush1.bf16.msra.mxu0 %v543
      %564 = vmatprep.subr.bf16.mxu0 0
      %565 = vmatpush1.bf16.msra.mxu0 %v544
      %566 = vmatprep.subr.bf16.mxu0 0
      %567 = vmatpush1.bf16.msra.mxu0 %v545
      %568 = vmatprep.subr.bf16.mxu0 0
      %569 = vmatpush1.bf16.msra.mxu0 %v546
      %570 = vmatprep.subr.bf16.mxu0 0
      %571 = vmatpush1.bf16.msra.mxu0 %v547
      %572 = vmatprep.subr.bf16.mxu0 0
      %573 = vmatpush1.bf16.msra.mxu0 0
      %574 = vmatprep.subr.bf16.mxu0 0
      %575 = vmatpush1.bf16.msra.mxu0 0
      %576 = vmatprep.subr.bf16.mxu0 0
      %577 = vmatpush1.bf16.msra.mxu0 0
      %578 = vmatprep.subr.bf16.mxu0 0
      %579 = vmatpush1.bf16.msra.mxu0 0
      %580 = vmatprep.subr.bf16.mxu0 0
      %581 = vmatpush1.bf16.msra.mxu0 0
      %582 = vmatprep.subr.bf16.mxu0 0
      %583 = vmatpush1.bf16.msra.mxu0 0
      %584 = vmatprep.subr.bf16.mxu0 0
      %585 = vmatpush1.bf16.msra.mxu0 0
      %586 = vmatprep.subr.bf16.mxu0 0
      %587 = vmatpush1.bf16.msra.mxu0 0
      %588 = vmatprep.mubr.bf16.mxu0 0
      %589 = vmatmul.mubr.bf16.gmra.mrb[0].mxu0 %v503
      %v590 = vpop.f32.mrb[0].mxu0
      %v591 = vadd.f32 %v507, %v590
      %v592 = vpop.f32.mrb[0].mxu0
      %v593 = vpop.f32.mrb[0].mxu0
      %v594 = vadd.f32 %v507, %v593
      %v595 = vpop.f32.mrb[0].mxu0
      %596 = vdwg.mxu0
      %v597 = vsub.f32 %v219, %v591
      %v598 = vsub.f32 %v220, %v594
      %v599 = vand.u32 2147483647, %v597
      %v600 = vand.u32 2147483647, %v598
      %v601 = vmul.f32 %v599, %v380
      %v602 = vmul.f32 %v600, %v385
      %v603 = vadd.f32 %v601, %v602
      %v604 = vrot.slane %v603, 4
      %v605 = vadd.f32 %v603, %v604
      %v606 = vrot.slane %v605, 2
      %v607 = vadd.f32 %v605, %v606
      %v608 = vrot.slane %v607, 1
      %v609 = vadd.f32 %v607, %v608
      %vm610 = vcmask 7168
      %v611 = vsel %vm610, %v221, 0.0
      %v612 = vsel %vm610, %v222, 0.0
      %v613 = vadd.f32 %v611, %v612
      %v614 = vrot.slane %v613, 4
      %v615 = vadd.f32 %v613, %v614
      %v616 = vrot.slane %v615, 2
      %v617 = vadd.f32 %v615, %v616
      %v618 = vrot.slane %v617, 1
      %v619 = vadd.f32 %v617, %v618
      %v620 = vlaneseq
      %v621 = vand.u32 %v620, 127
      %vm622 = vcmp.eq.s32.totalorder %v621, 127
      %624 = vset.pattern.permute.xlu0 0
      %625 = vperm.xlu0 %624, %v619
      %v626 = vpop.permute.xlu0 %625
      %v628 = vsel %vm622, %v626, %v609
      %629 = vst [vmem:[%s217] sm:$0x1] %v628
      %p630 = scmp.lt.s32.totalorder %s15, 1
      %s631 = scalar_select %p630, %s15, 1
      %s632 = scalar_lea.vmem %s4, %s631
      // Predicated region
      $region37: #{simmim_forward.1} parent=35 // pred_check
        %p633 = pneg %p127
      $region38: #{simmim_forward.1} parent=35 // pred_check_branch
        %635 = sbr.rel (%p633) target = $region40
      $region39: #{simmim_forward.1} parent=35 // pred_region
        _
      $region40: #{simmim_forward.1} parent=35 // pred_fallthru
        _
    $region36: #{simmim_forward.1} parent=5 // pred_fallthru
      _
    %p636 = scmp.le.s32.totalorder 2, %s10
    // Predicated region
    $region41: #{simmim_forward.1} parent=5 // pred_check
      %p637 = pneg %p636
    $region42: #{simmim_forward.1} parent=5 // pred_check_branch
      %639 = sbr.rel (%p637) target = $region44
    $region43: #{simmim_forward.1} parent=5 // pred_region
      %s640 = ssub.s32 %s10, 2
      // Predicated region
      $region45: #{simmim_forward.1} parent=43 // pred_check
        %p641 = pneg %p133
      $region46: #{simmim_forward.1} parent=43 // pred_check_branch
        %643 = sbr.rel (%p641) target = $region48
      $region47: #{simmim_forward.1} parent=43 // pred_region
        %p644 = scmp.lt.s32.totalorder %s16, 1
        %s645 = scalar_select %p644, %s16, 1
        %s646 = scalar_lea.vmem %s4, %s645
      $region48: #{simmim_forward.1} parent=43 // pred_fallthru
        _
    $region44: #{simmim_forward.1} parent=5 // pred_fallthru
      _
  $region6: #{simmim_forward.1} parent=0 // loop_footer
    %s14 = sadd.s32 1, %s10
  $region7: #{simmim_forward.1} parent=0 // loop_footer_branch
    %9 = sbr.rel target = $region3
  $region8: #{simmim_forward.1} parent=0 // loop_exit
    _

</llo_original>
